<compile_context>
chip_gen: v7x
topology: tpu7x:2x2x1
jax: 0.10.0
libtpu: 0.0.40
codegen_flags: <defaults>
</compile_context>

<pallas_src>
import functools

import jax
import jax.numpy as jnp
from jax.experimental import pallas as pl
from jax.experimental.pallas import tpu as pltpu

EPS = 1e-5
_MIB = 2 ** 20


def _cdiv(a, b):
    return -(-a // b)


def _vmem_capacity_bytes():
    try:
        return int(pltpu.get_tpu_info().vmem_capacity_bytes)
    except Exception:
        return 64 * _MIB                      # conservative (v7x per-TC figure)


def _round_rows(t):
    t = int(t)
    if t >= 256:
        return (t // 128) * 128               # full MXU M-tiles, unmasked stores
    return max(8, (t // 8) * 8)


def _vmem_limit(needed, cap):
    # never go below the default scoped limit; leave headroom below capacity.
    return int(min(max(int(needed) + 4 * _MIB, 32 * _MIB), (cap * 3) // 4))


# ----------------------------- kernels ------------------------------------ #

def _bn1_stats_kernel(x_ref, sum_ref, sumsq_ref):
    """Per-split partial sum / sum-of-squares of x over rows (BN1 statistics)."""
    @pl.when(pl.program_id(1) == 0)
    def _init():
        sum_ref[...] = jnp.zeros_like(sum_ref)
        sumsq_ref[...] = jnp.zeros_like(sumsq_ref)

    x = x_ref[...]                                        # (tps, C) f32
    sum_ref[...] += jnp.sum(x, axis=0, keepdims=True)[None]
    sumsq_ref[...] += jnp.sum(x * x, axis=0, keepdims=True)[None]


def _bn2_stats_kernel(x_ref, w_ref, bias_ref, scale1_ref, shift1_ref,
                      sum2_ref, sumsq2_ref, *, mm_dtype):
    """Recompute norm_in, fused branch matmul, per-split BN2 sum / sumsq."""
    @pl.when(pl.program_id(1) == 0)
    def _init():
        sum2_ref[...] = jnp.zeros_like(sum2_ref)
        sumsq2_ref[...] = jnp.zeros_like(sumsq2_ref)

    x = x_ref[...]                                        # (tps, C) f32
    norm_in = jnp.maximum(x * scale1_ref[...] + shift1_ref[...], 0.0)
    raw = jnp.dot(norm_in.astype(mm_dtype), w_ref[...],
                  preferred_element_type=jnp.float32) + bias_ref[...]
    # padded rows (x==0) contribute relu(shift1)@W + bias; subtracted in wrapper.
    sum2_ref[...] += jnp.sum(raw, axis=0, keepdims=True)[None]
    sumsq2_ref[...] += jnp.sum(raw * raw, axis=0, keepdims=True)[None]


def _apply_kernel(x_ref, w2_ref, scale1_ref, shift1_ref, shift2_ref, out_ref,
                  *, mm_dtype, nb):
    """norm_in + fused matmul (BN2 scale folded into w2, bias+shift into shift2),
    ReLU, residual broadcast of x across branches via lane concat."""
    x = x_ref[...]                                        # (tp, C) f32
    norm_in = jnp.maximum(x * scale1_ref[...] + shift1_ref[...], 0.0)
    y = jnp.dot(norm_in.astype(mm_dtype), w2_ref[...],
                preferred_element_type=jnp.float32) + shift2_ref[...]
    y = jnp.maximum(y, 0.0)
    res = x if nb == 1 else jnp.concatenate([x] * nb, axis=-1)
    out_ref[...] = (y + res).astype(out_ref.dtype)


# --------------------------- channels-last core ---------------------------- #

def _branch_block_norm_pc(x_pc, w_all_f32, bias_all, gamma, beta, *,
                          tile_p=None, tile_p_stats=None,
                          out_dtype=jnp.float32, mm_dtype=None):
    """x_pc: (P, C) channels-last; w_all_f32: (C, nb*C); bias_all: (1, nb*C).
    Returns (P, nb*C) with branch-major columns (b*C + c_out)."""
    P, C = x_pc.shape
    nbc = w_all_f32.shape[1]
    nb = nbc // C

    if mm_dtype is None:
        # bf16 MXU path only for production-sized channel counts (accuracy).
        mm_dtype = jnp.bfloat16 if C >= 128 else jnp.float32
    mb = jnp.dtype(mm_dtype).itemsize
    ob = jnp.dtype(out_dtype).itemsize

    vmem_cap = _vmem_capacity_bytes()
    data_budget = 40 * _MIB if vmem_cap >= 100 * _MIB else 16 * _MIB

    # VMEM accounting: constant-index-map operands are still double-buffered.
    const_apply = 2 * (C * nbc * mb + 2 * C * 4 + nbc * 4)
    const_stats = 2 * (C * nbc * mb + nbc * 4 + 2 * C * 4)
    per_row_apply = 8 * C + 2 * nbc * ob + 4 * C + C * mb + 8 * nbc
    per_row_stats = 8 * C + 4 * C + C * mb + 8 * nbc

    p_cap = ((P + 127) // 128) * 128 if P >= 128 else ((P + 7) // 8) * 8

    if tile_p is None:
        tile_p = (data_budget - const_apply) // max(per_row_apply, 1)
    tp = max(8, min(_round_rows(tile_p), p_cap))

    # stats pass tile: independent and larger (no wide output), multiple of tp.
    if tile_p_stats is None:
        tile_p_stats = (data_budget - const_stats) // max(per_row_stats, 1)
    k = max(1, int(tile_p_stats) // tp)
    k = min(k, _cdiv(P, tp))
    tps = k * tp

    n_tiles_stats = _cdiv(P, tps)
    n_split = 2 if n_tiles_stats >= 2 else 1          # both TCs on v7x megacore
    tiles_per_split = _cdiv(n_tiles_stats, n_split)
    Pp = n_split * tiles_per_split * tps
    n_tiles_apply = Pp // tp

    x_pc = x_pc.astype(jnp.float32)
    if Pp != P:
        x_pc = jnp.pad(x_pc, ((0, Pp - P), (0, 0)))

    w_mm = w_all_f32.astype(mm_dtype)
    bias_all = bias_all.astype(jnp.float32)

    # ----------------- pass 1a: BN1 per-split partial stats ---------------- #
    ce1 = pl.CostEstimate(flops=int(3 * Pp * C), transcendentals=0,
                          bytes_accessed=int(Pp * C * 4))
    sum1_p, sumsq1_p = pl.pallas_call(
        _bn1_stats_kernel,
        grid_spec=pltpu.PrefetchScalarGridSpec(
            num_scalar_prefetch=0,
            grid=(n_split, tiles_per_split),
            in_specs=[pl.BlockSpec((tps, C),
                                   lambda s, i: (s * tiles_per_split + i, 0))],
            out_specs=(pl.BlockSpec((1, 1, C), lambda s, i: (s, 0, 0)),
                       pl.BlockSpec((1, 1, C), lambda s, i: (s, 0, 0))),
        ),
        out_shape=(jax.ShapeDtypeStruct((n_split, 1, C), jnp.float32),
                   jax.ShapeDtypeStruct((n_split, 1, C), jnp.float32)),
        compiler_params=pltpu.CompilerParams(
            dimension_semantics=("parallel", "arbitrary"),
            vmem_limit_bytes=_vmem_limit(2 * tps * C * 4, vmem_cap)),
        cost_estimate=ce1,
    )(x_pc)

    # ----------------- BN1 fold (tiny, wrapper) ---------------------------- #
    inv_n1 = 1.0 / float(P)
    sum1 = jnp.sum(sum1_p[:, 0, :], axis=0)
    sumsq1 = jnp.sum(sumsq1_p[:, 0, :], axis=0)
    mean1 = sum1 * inv_n1
    # TODO(synk): E[x^2]-E[x]^2 can cancel when |mean| >> std; a mean-shifted
    #             second pass would be more robust for extreme inputs.
    var1 = jnp.maximum(sumsq1 * inv_n1 - mean1 * mean1, 0.0)
    s1 = jax.lax.rsqrt(var1 + EPS) * gamma.astype(jnp.float32)
    scale1 = s1.reshape(1, C)
    shift1 = (beta.astype(jnp.float32) - mean1 * s1).reshape(1, C)

    # ----------------- pass 1b: BN2 per-split partial stats ---------------- #
    kern2 = functools.partial(_bn2_stats_kernel, mm_dtype=mm_dtype)
    needed2 = 2 * tps * C * 4 + tps * (4 * C + C * mb + 8 * nbc) + const_stats
    ce2 = pl.CostEstimate(
        flops=int(2 * Pp * C * nbc + 3 * Pp * C + 5 * Pp * nbc),
        transcendentals=0,
        bytes_accessed=int(Pp * C * 4 + C * nbc * mb))
    sum2_p, sumsq2_p = pl.pallas_call(
        kern2,
        grid_spec=pltpu.PrefetchScalarGridSpec(
            num_scalar_prefetch=0,
            grid=(n_split, tiles_per_split),
            in_specs=[
                pl.BlockSpec((tps, C), lambda s, i: (s * tiles_per_split + i, 0)),
                pl.BlockSpec((C, nbc), lambda s, i: (0, 0)),
                pl.BlockSpec((1, nbc), lambda s, i: (0, 0)),
                pl.BlockSpec((1, C), lambda s, i: (0, 0)),
                pl.BlockSpec((1, C), lambda s, i: (0, 0)),
            ],
            out_specs=(pl.BlockSpec((1, 1, nbc), lambda s, i: (s, 0, 0)),
                       pl.BlockSpec((1, 1, nbc), lambda s, i: (s, 0, 0))),
        ),
        out_shape=(jax.ShapeDtypeStruct((n_split, 1, nbc), jnp.float32),
                   jax.ShapeDtypeStruct((n_split, 1, nbc), jnp.float32)),
        compiler_params=pltpu.CompilerParams(
            dimension_semantics=("parallel", "arbitrary"),
            vmem_limit_bytes=_vmem_limit(needed2, vmem_cap)),
        cost_estimate=ce2,
    )(x_pc, w_mm, bias_all, scale1, shift1)

    # -------- BN2 fold + constant folding into w2 / shift2 (wrapper) -------- #
    sum2 = jnp.sum(sum2_p[:, 0, :], axis=0).reshape(1, nbc)
    sumsq2 = jnp.sum(sumsq2_p[:, 0, :], axis=0).reshape(1, nbc)
    n_pad = Pp - P
    if n_pad:
        # analytic contribution of zero-padded rows: relu(shift1) @ W + bias
        pad_norm = jnp.maximum(shift1, 0.0)
        pad_raw = jnp.dot(pad_norm.astype(mm_dtype), w_mm,
                          preferred_element_type=jnp.float32) + bias_all
        sum2 = sum2 - float(n_pad) * pad_raw
        sumsq2 = sumsq2 - float(n_pad) * pad_raw * pad_raw

    count2 = float(nb * P)
    sum2_c = jnp.sum(sum2.reshape(nb, C), axis=0)
    sumsq2_c = jnp.sum(sumsq2.reshape(nb, C), axis=0)
    mean2 = sum2_c / count2
    var2 = jnp.maximum(sumsq2_c / count2 - mean2 * mean2, 0.0)
    s2 = jax.lax.rsqrt(var2 + EPS) * gamma.astype(jnp.float32)
    scale2 = jnp.tile(s2, (nb,)).reshape(1, nbc)
    shift2 = bias_all * scale2 + jnp.tile(
        beta.astype(jnp.float32) - mean2 * s2, (nb,)).reshape(1, nbc)
    w2_mm = (w_all_f32 * scale2).astype(mm_dtype)    # BN2 scale folded into weights

    # -------- pass 2: normalize + ReLU + residual, tile-parallel ----------- #
    kern3 = functools.partial(_apply_kernel, mm_dtype=mm_dtype, nb=nb)
    needed3 = (2 * tp * C * 4 + 2 * tp * nbc * ob
               + tp * (4 * C + C * mb + 8 * nbc) + const_apply)
    ce3 = pl.CostEstimate(
        flops=int(2 * Pp * C * nbc + 3 * Pp * C + 3 * Pp * nbc),
        transcendentals=0,
        bytes_accessed=int(Pp * C * 4 + Pp * nbc * ob + C * nbc * mb))
    out_pc = pl.pallas_call(
        kern3,
        grid_spec=pltpu.PrefetchScalarGridSpec(
            num_scalar_prefetch=0,
            grid=(n_tiles_apply,),
            in_specs=[
                pl.BlockSpec((tp, C), lambda i: (i, 0)),
                pl.BlockSpec((C, nbc), lambda i: (0, 0)),
                pl.BlockSpec((1, C), lambda i: (0, 0)),
                pl.BlockSpec((1, C), lambda i: (0, 0)),
                pl.BlockSpec((1, nbc), lambda i: (0, 0)),
            ],
            out_specs=pl.BlockSpec((tp, nbc), lambda i: (i, 0)),
        ),
        out_shape=jax.ShapeDtypeStruct((Pp, nbc), out_dtype),
        compiler_params=pltpu.CompilerParams(
            dimension_semantics=("parallel",),
            vmem_limit_bytes=_vmem_limit(needed3, vmem_cap)),
        cost_estimate=ce3,
    )(x_pc, w2_mm, scale1, shift1, shift2)

    return out_pc[:P]


# ------------------------------ NCHW wrapper ------------------------------- #

def branch_block_norm(x_nchw, conv_w, conv_b, gamma, beta,
                      average_channels=False, tile_p=None, tile_p_stats=None,
                      out_dtype=jnp.float32, mm_dtype=None):
    """x_nchw: (N, C, H, W); conv_w: (nb, C, C); conv_b: (nb, C); gamma/beta: (C,)."""
    N, C, H, W = x_nchw.shape
    nb = conv_w.shape[0]
    P = N * H * W
    nbc = nb * C

    # TODO(synk): NCHW<->NHWC glue for the PyTorch layout; channels-last callers
    #             should use _branch_block_norm_pc directly (saves 2 HBM passes).
    x_pc = jnp.transpose(x_nchw, (0, 2, 3, 1)).reshape(P, C).astype(jnp.float32)

    # fuse per-branch 1x1 conv weights into one (C_in, nb*C_out) matrix
    w_all = jnp.transpose(conv_w, (2, 0, 1)).reshape(C, nbc).astype(jnp.float32)
    bias_all = conv_b.reshape(1, nbc).astype(jnp.float32)

    out_pc = _branch_block_norm_pc(
        x_pc, w_all, bias_all, gamma, beta,
        tile_p=tile_p, tile_p_stats=tile_p_stats,
        out_dtype=out_dtype, mm_dtype=mm_dtype)

    out5 = jnp.transpose(out_pc.reshape(N, H, W, nb, C).astype(jnp.float32),
                         (3, 0, 4, 1, 2))                 # (nb, N, C, H, W)
    if average_channels:
        return jnp.mean(out5, axis=0)
    # exact replication of `normOutputs.view(x.size(0), -1, *x.shape[2:])`
    return out5.reshape(N, nbc, H, W)


# ------------------------------ reference ---------------------------------- #

def _reference(x, conv_w, conv_b, gamma, beta, average_channels=False):
    """Plain-JAX mirror of the PyTorch forward (NCHW), for a sanity check."""
    g = gamma[None, :, None, None]
    bta = beta[None, :, None, None]

    def bn_relu(t):
        mean = jnp.mean(t, axis=(0, 2, 3), keepdims=True)
        var = jnp.mean((t - mean) ** 2, axis=(0, 2, 3), keepdims=True)
        return jnp.maximum((t - mean) / jnp.sqrt(var + EPS) * g + bta, 0.0)

    norm_in = bn_relu(x)
    raws = [
        jnp.einsum("nchw,oc->nohw", norm_in, conv_w[i]) + conv_b[i][None, :, None, None]
        for i in range(conv_w.shape[0])
    ]
    raw = jnp.stack(raws)                              # (nb, N, C, H, W)
    merged = raw.reshape(-1, *raw.shape[2:])           # (nb*N, C, H, W)
    normed = bn_relu(merged).reshape(raw.shape)
    norm_out = normed + x[None]
    if average_channels:
        return jnp.mean(norm_out, axis=0)
    return norm_out.reshape(x.shape[0], -1, *x.shape[2:])


if __name__ == "__main__":
    N, C, H, W = 2, 8, 16, 16   # batch, in_channels, spatial
    NB = 3                      # number of branches

    key = jax.random.PRNGKey(0)
    kx, kw, kb, kg, kbe = jax.random.split(key, 5)
    x = jax.random.normal(kx, (N, C, H, W), jnp.float32)
    conv_w = jax.random.normal(kw, (NB, C, C), jnp.float32) * 0.1   # 1x1 conv weights
    conv_b = jax.random.normal(kb, (NB, C), jnp.float32) * 0.1
    gamma = 1.0 + 0.1 * jax.random.normal(kg, (C,), jnp.float32)    # shared BN affine
    beta = 0.1 * jax.random.normal(kbe, (C,), jnp.float32)

    # tile_p = tile_p_stats = 128 -> 4 stats tiles split over 2 "cores":
    # exercises the per-split partial sums and cross-tile accumulation paths.
    y = branch_block_norm(x, conv_w, conv_b, gamma, beta,
                          average_channels=False, tile_p=128, tile_p_stats=128)
    y = jax.block_until_ready(y)

    y_ref = _reference(x, conv_w, conv_b, gamma, beta, average_channels=False)
    assert y.shape == (N, NB * C, H, W), y.shape
    err = float(jnp.max(jnp.abs(y - y_ref)))
    assert jnp.allclose(y, y_ref, atol=2e-3, rtol=2e-3), err
    print("KERNEL_OK")
</pallas_src>

<mosaic_0001>
module attributes {stable_mosaic.version = 11 : i64} {
  func.func @_bn1_stats_kernel(%arg0: i32, %arg1: i32, %arg2: memref<128x8xf32, #tpu.memory_space<vmem>>, %arg3: memref<1x1x8xf32, #tpu.memory_space<vmem>>, %arg4: memref<1x1x8xf32, #tpu.memory_space<vmem>>) attributes {dimension_semantics = [#tpu.dimension_semantics<parallel>, #tpu.dimension_semantics<arbitrary>], iteration_bounds = array<i64: 2, 2>, scalar_prefetch = 0 : i64, scratch_operands = 0 : i64, tpu.core_type = #tpu.core_type<tc>, window_params = [{transform_indices = @transform_0, window_bounds = array<i64: 128, 8>}, {transform_indices = @transform_1, window_bounds = array<i64: 1, 1, 8>}, {transform_indices = @transform_2, window_bounds = array<i64: 1, 1, 8>}]} {
    %c0_i32 = arith.constant 0 : i32
    %0 = arith.cmpi eq, %arg1, %c0_i32 : i32
    %1 = arith.extui %0 : i1 to i32
    %c0_i32_0 = arith.constant 0 : i32
    %2 = arith.cmpi ne, %1, %c0_i32_0 : i32
    scf.if %2 {
      %cst_15 = arith.constant 0.000000e+00 : f32
      %17 = vector.broadcast %cst_15 : f32 to vector<1x1x8xf32>
      %c0_16 = arith.constant 0 : index
      %c0_17 = arith.constant 0 : index
      %c0_18 = arith.constant 0 : index
      %18 = vector.load %arg3[%c0_16, %c0_17, %c0_18] : memref<1x1x8xf32, #tpu.memory_space<vmem>>, vector<1x1x8xf32>
      tpu.vector_store %arg3[%c0_16, %c0_17, %c0_18], %17 {strides = array<i32>} : memref<1x1x8xf32, #tpu.memory_space<vmem>>, vector<1x1x8xf32>,
      %cst_19 = arith.constant 0.000000e+00 : f32
      %19 = vector.broadcast %cst_19 : f32 to vector<1x1x8xf32>
      %c0_20 = arith.constant 0 : index
      %c0_21 = arith.constant 0 : index
      %c0_22 = arith.constant 0 : index
      %20 = vector.load %arg4[%c0_20, %c0_21, %c0_22] : memref<1x1x8xf32, #tpu.memory_space<vmem>>, vector<1x1x8xf32>
      tpu.vector_store %arg4[%c0_20, %c0_21, %c0_22], %19 {strides = array<i32>} : memref<1x1x8xf32, #tpu.memory_space<vmem>>, vector<1x1x8xf32>,
    } else {
    }
    %c0 = arith.constant 0 : index
    %c0_1 = arith.constant 0 : index
    %3 = vector.load %arg2[%c0, %c0_1] : memref<128x8xf32, #tpu.memory_space<vmem>>, vector<128x8xf32>
    %c0_2 = arith.constant 0 : index
    %c0_3 = arith.constant 0 : index
    %c0_4 = arith.constant 0 : index
    %4 = vector.load %arg3[%c0_2, %c0_3, %c0_4] : memref<1x1x8xf32, #tpu.memory_space<vmem>>, vector<1x1x8xf32>
    %cst = arith.constant dense<0.000000e+00> : vector<8xf32>
    %5 = vector.multi_reduction <add>, %3, %cst [0] : vector<128x8xf32> to vector<8xf32>
    %6 = vector.shape_cast %5 : vector<8xf32> to vector<1x8xf32>
    %7 = vector.shape_cast %6 : vector<1x8xf32> to vector<1x1x8xf32>
    %8 = arith.addf %4, %7 : vector<1x1x8xf32>
    %c0_5 = arith.constant 0 : index
    %c0_6 = arith.constant 0 : index
    %c0_7 = arith.constant 0 : index
    %9 = vector.load %arg3[%c0_5, %c0_6, %c0_7] : memref<1x1x8xf32, #tpu.memory_space<vmem>>, vector<1x1x8xf32>
    tpu.vector_store %arg3[%c0_5, %c0_6, %c0_7], %8 {strides = array<i32>} : memref<1x1x8xf32, #tpu.memory_space<vmem>>, vector<1x1x8xf32>,
    %c0_8 = arith.constant 0 : index
    %c0_9 = arith.constant 0 : index
    %c0_10 = arith.constant 0 : index
    %10 = vector.load %arg4[%c0_8, %c0_9, %c0_10] : memref<1x1x8xf32, #tpu.memory_space<vmem>>, vector<1x1x8xf32>
    %11 = arith.mulf %3, %3 : vector<128x8xf32>
    %cst_11 = arith.constant dense<0.000000e+00> : vector<8xf32>
    %12 = vector.multi_reduction <add>, %11, %cst_11 [0] : vector<128x8xf32> to vector<8xf32>
    %13 = vector.shape_cast %12 : vector<8xf32> to vector<1x8xf32>
    %14 = vector.shape_cast %13 : vector<1x8xf32> to vector<1x1x8xf32>
    %15 = arith.addf %10, %14 : vector<1x1x8xf32>
    %c0_12 = arith.constant 0 : index
    %c0_13 = arith.constant 0 : index
    %c0_14 = arith.constant 0 : index
    %16 = vector.load %arg4[%c0_12, %c0_13, %c0_14] : memref<1x1x8xf32, #tpu.memory_space<vmem>>, vector<1x1x8xf32>
    tpu.vector_store %arg4[%c0_12, %c0_13, %c0_14], %15 {strides = array<i32>} : memref<1x1x8xf32, #tpu.memory_space<vmem>>, vector<1x1x8xf32>,
    return
  }
  func.func @transform_0(%arg0: i32, %arg1: i32) -> (i32, i32) {
    %c2_i32 = arith.constant 2 : i32
    %0 = arith.muli %arg0, %c2_i32 : i32
    %1 = arith.addi %0, %arg1 : i32
    %c0_i32 = arith.constant 0 : i32
    %c0_i32_0 = arith.constant 0 : i32
    return %1, %c0_i32 : i32, i32
  }
  func.func @transform_1(%arg0: i32, %arg1: i32) -> (i32, i32, i32) {
    %c0_i32 = arith.constant 0 : i32
    %c0_i32_0 = arith.constant 0 : i32
    %c0_i32_1 = arith.constant 0 : i32
    return %arg0, %c0_i32, %c0_i32_0 : i32, i32, i32
  }
  func.func @transform_2(%arg0: i32, %arg1: i32) -> (i32, i32, i32) {
    %c0_i32 = arith.constant 0 : i32
    %c0_i32_0 = arith.constant 0 : i32
    %c0_i32_1 = arith.constant 0 : i32
    return %arg0, %c0_i32, %c0_i32_0 : i32, i32, i32
  }
}

</mosaic_0001>

<llo_original>
// kernel: tpu_custom_call.1
$region0: #{tpu_custom_call.1}
  #allocation0 [shape = 'u32[]', space=smem, size = 0x4, offset = 0x4, fixed_abs, tag = 'smem constant byte address 0x4 - core index']
  #allocation1 [shape = 'u32[144,128]{1,0:T(1,128)}', space=vmem, size = 0x12000, scoped, tag = 'internal scratch']
  %s0 = inlined_call_operand.vmem [shape: f32[512,8], index: 0, kind: input, shape index: {}]
  %s1 = inlined_call_operand.hbm [shape: f32[2,1,8], index: 1, kind: output, shape index: {0}]
  %s2 = inlined_call_operand.hbm [shape: f32[2,1,8], index: 2, kind: output, shape index: {1}]
  %3 = xla_tuple %s1, %s2
  %s4 = sld [smem:[#allocation0]]
  $region49: #{tpu_custom_call.1} parent=0
    _
  %s6 = ssub.s32 1, %s4
  %s7 = scalar_select 0, %s6, %s4
  $region1: #{tpu_custom_call.1} parent=0
    #allocation2 [shape = 'u8[1024]{0}', space=vmem, size = 0x400, scoped, tag = 'output window, operand 0']
    #allocation3 [shape = 's32[2]{0}', space=sflag, size = 0x8, scoped, tag = 'scoped memory for tpu_custom_call.1']
    #allocation4 [shape = 'u8[1024]{0}', space=vmem, size = 0x400, scoped, tag = 'output window, operand 1']
    #allocation5 [shape = 's32[2]{0}', space=sflag, size = 0x8, scoped, tag = 'scoped memory for tpu_custom_call.1']
    %8 = vsyncpa [#allocation3], 0
    %s9 = scalar_lea.sflag [#allocation3], 1
    %10 = vsyncpa %s9, 0
    %11 = vsyncpa [#allocation5], 0
    %s12 = scalar_lea.sflag [#allocation5], 1
    %13 = vsyncpa %s12, 0
    loop: start=0, step=1, limit=6
    $region2: #{tpu_custom_call.1} parent=1 // loop_pre_header
      _
    $region3: #{tpu_custom_call.1} parent=1 // loop_header
      %s15 = sphi 0, %s19
      %p16 = scmp.ge.s32.totalorder %s15, 6
      %s22 = sphi 0, %s34
      %s23 = sphi 0, %s30
      %s24 = sphi 0, %s22
      %s25 = sphi 0, %s23
      %s26 = sphi 0, %s24
      %s27 = sphi 0, %s25
      %s41 = sphi 0, %s43
      %s44 = sphi 0, %s41
      %s45 = sphi 0, %s44
      %s61 = sphi 0, %s45
      %s67 = sphi 0, %s69
      %s70 = sphi 0, %s67
      %s71 = sphi 0, %s70
      %s87 = sphi 0, %s71
      %s93 = sphi 0, %s95
      %s96 = sphi 0, %s93
      %s97 = sphi 0, %s96
      %s113 = sphi 0, %s97
    $region4: #{tpu_custom_call.1} parent=1 // loop_header_branch
      %18 = sbr.rel (%p16) target = $region8
    $region5: #{tpu_custom_call.1} parent=1 // loop_body
      %s20 = ssub.s32 %s15, 1
      %s21 = ssub.s32 %s15, 2
      %s28 = sadd.s32 1, %s23
      %p29 = scmp.ge.s32.totalorder %s28, 2
      %s30 = scalar_select %p29, 0, %s28
      %s31 = sadd.s32 1, %s22
      %s32 = scalar_select %p29, %s31, %s22
      %p33 = scmp.ge.s32.totalorder %s32, 2
      %s34 = scalar_select %p33, 0, %s32
      %s35 = smul.u32 %s22, 2
      %s36 = sadd.s32 %s35, %s23
      %s37 = smul.u32 %s34, 2
      %s38 = sadd.s32 %s37, %s30
      %s39 = ssub.s32 %s36, %s38
      %p40 = scmp.eq.s32.totalorder %s39, 0
      %s42 = sadd.s32 %s41, 1
      %s43 = scalar_select %p40, %s41, %s42
      %p46 = pneg %p40
      %p47 = scmp.eq.s32.totalorder %s15, 3
      %p48 = por %p46, %p47
      %p49 = scmp.ne.s32.totalorder %s41, %s44
      %p50 = scmp.eq.s32.totalorder %s15, 0
      %p51 = por %p49, %p50
      %p52 = scmp.ne.s32.totalorder %s41, %s44
      %p53 = scmp.eq.s32.totalorder %s20, 3
      %p54 = por %p52, %p53
      %p55 = scmp.ne.s32.totalorder %s44, %s45
      %p56 = scmp.eq.s32.totalorder %s20, 0
      %p57 = por %p55, %p56
      %p58 = scmp.ne.s32.totalorder %s44, %s45
      %p59 = scmp.eq.s32.totalorder %s21, 3
      %p60 = por %p58, %p59
      %p62 = scmp.ne.s32.totalorder %s45, %s61
      %p63 = scmp.eq.s32.totalorder %s21, 0
      %p64 = por %p62, %p63
      %s65 = ssub.s32 %s22, %s34
      %p66 = scmp.eq.s32.totalorder %s65, 0
      %s68 = sadd.s32 %s67, 1
      %s69 = scalar_select %p66, %s67, %s68
      %p72 = pneg %p66
      %p73 = scmp.eq.s32.totalorder %s15, 3
      %p74 = por %p72, %p73
      %p75 = scmp.ne.s32.totalorder %s67, %s70
      %p76 = scmp.eq.s32.totalorder %s15, 0
      %p77 = por %p75, %p76
      %p78 = scmp.ne.s32.totalorder %s67, %s70
      %p79 = scmp.eq.s32.totalorder %s20, 3
      %p80 = por %p78, %p79
      %p81 = scmp.ne.s32.totalorder %s70, %s71
      %p82 = scmp.eq.s32.totalorder %s20, 0
      %p83 = por %p81, %p82
      %p84 = scmp.ne.s32.totalorder %s70, %s71
      %p85 = scmp.eq.s32.totalorder %s21, 3
      %p86 = por %p84, %p85
      %p88 = scmp.ne.s32.totalorder %s71, %s87
      %p89 = scmp.eq.s32.totalorder %s21, 0
      %p90 = por %p88, %p89
      %s91 = ssub.s32 %s22, %s34
      %p92 = scmp.eq.s32.totalorder %s91, 0
      %s94 = sadd.s32 %s93, 1
      %s95 = scalar_select %p92, %s93, %s94
      %p98 = pneg %p92
      %p99 = scmp.eq.s32.totalorder %s15, 3
      %p100 = por %p98, %p99
      %p101 = scmp.ne.s32.totalorder %s93, %s96
      %p102 = scmp.eq.s32.totalorder %s15, 0
      %p103 = por %p101, %p102
      %p104 = scmp.ne.s32.totalorder %s93, %s96
      %p105 = scmp.eq.s32.totalorder %s20, 3
      %p106 = por %p104, %p105
      %p107 = scmp.ne.s32.totalorder %s96, %s97
      %p108 = scmp.eq.s32.totalorder %s20, 0
      %p109 = por %p107, %p108
      %p110 = scmp.ne.s32.totalorder %s96, %s97
      %p111 = scmp.eq.s32.totalorder %s21, 3
      %p112 = por %p110, %p111
      %p114 = scmp.ne.s32.totalorder %s97, %s113
      %p115 = scmp.eq.s32.totalorder %s21, 0
      %p116 = por %p114, %p115
      %p117 = scmp.le.s32.totalorder 1, %s15
      %p118 = scmp.lt.s32.totalorder %s15, 5
      %p119 = pnand %p117, %p118
      %p120 = pneg %p119
      // Predicated region
      $region9: #{tpu_custom_call.1} parent=5 // pred_check
        _
      $region10: #{tpu_custom_call.1} parent=5 // pred_check_branch
        %122 = sbr.rel (%p119) target = $region12
      $region11: #{tpu_custom_call.1} parent=5 // pred_region
        %s123 = ssub.s32 %s15, 1
      $region12: #{tpu_custom_call.1} parent=5 // pred_fallthru
        _
      %p124 = scmp.lt.s32.totalorder %s15, 4
      // Predicated region
      $region13: #{tpu_custom_call.1} parent=5 // pred_check
        %p125 = pneg %p124
      $region14: #{tpu_custom_call.1} parent=5 // pred_check_branch
        %127 = sbr.rel (%p125) target = $region16
      $region15: #{tpu_custom_call.1} parent=5 // pred_region
        // Predicated region
        $region17: #{tpu_custom_call.1} parent=15 // pred_check
          %p128 = pneg %p51
        $region18: #{tpu_custom_call.1} parent=15 // pred_check_branch
          %130 = sbr.rel (%p128) target = $region20
        $region19: #{tpu_custom_call.1} parent=15 // pred_region
          %s131 = smul.u32 %s22, 2
          %s132 = sadd.s32 %s131, %s23
          %s133 = smul.u32 16, %s132
          %p134 = scmp.lt.s32.totalorder %s133, 63
          %s135 = scalar_select %p134, %s133, 63
          %s136 = smul.addr %s135, 8
          %s137 = scalar_lea.vmem %s0, %s136
          %s138 = smul.u32 %s22, 2
          %s139 = sadd.s32 %s138, %s23
          %s140 = smul.u32 16, %s139
        $region20: #{tpu_custom_call.1} parent=15 // pred_fallthru
          _
      $region16: #{tpu_custom_call.1} parent=5 // pred_fallthru
        _
      %p141 = scmp.le.s32.totalorder 1, %s15
      %p142 = scmp.lt.s32.totalorder %s15, 5
      %p143 = pnand %p141, %p142
      %p144 = pneg %p143
      // Predicated region
      $region21: #{tpu_custom_call.1} parent=5 // pred_check
        _
      $region22: #{tpu_custom_call.1} parent=5 // pred_check_branch
        %146 = sbr.rel (%p143) target = $region24
      $region23: #{tpu_custom_call.1} parent=5 // pred_region
        %s147 = ssub.s32 %s15, 1
        %s148 = smul.u32 %s24, 2
        %s149 = sadd.s32 %s148, %s25
        %s150 = smul.u32 16, %s149
        %p151 = scmp.lt.s32.totalorder %s150, 63
        %s152 = scalar_select %p151, %s150, 63
        %s153 = smul.addr %s152, 8
        %s154 = scalar_lea.vmem %s0, %s153
        %p155 = pneg %p57
        %p156 = pneg %p54
        %p157 = pneg %p83
        %p158 = pneg %p80
        %s159 = sand.u32 %s70, 1
        %s160 = scalar_lea.sflag [#allocation3], %s159
        %s161 = sand.u32 %s70, 1
        %s162 = scalar_lea.vmem [#allocation2], %s161
        %p163 = pneg %p109
        %p164 = pneg %p106
        %s165 = sand.u32 %s96, 1
        %s166 = scalar_lea.sflag [#allocation5], %s165
        %s167 = sand.u32 %s96, 1
        %s168 = scalar_lea.vmem [#allocation4], %s167
        %s169 = smul.u32 %s24, 2
        %s170 = sadd.s32 %s169, %s25
        %s171 = smul.u32 16, %s170
        %p172 = scmp.lt.s32.totalorder %s171, 63
        %s173 = scalar_select %p172, %s171, 63
        %s174 = smul.addr %s173, 8
        %s175 = scalar_lea.vmem %s0, %s174
        %s176 = smul.u32 %s24, 2
        %s177 = sadd.s32 %s176, %s25
        %s178 = smul.u32 16, %s177
        %p179 = scmp.eq.s32.totalorder %s25, 0
        // Predicated region
        $region25: #{tpu_custom_call.1} parent=23 // pred_check
          %p180 = pneg %p179
        $region26: #{tpu_custom_call.1} parent=23 // pred_check_branch
          %182 = sbr.rel (%p180) target = $region28
        $region27: #{tpu_custom_call.1} parent=23 // pred_region
          %vm183 = vcmask 57344
          %184 = vst.msk [vmem:[%s162] sm:$0x1] %vm183, 0.0
          %185 = vst.msk [vmem:[%s168] sm:$0x1] %vm183, 0.0
        $region28: #{tpu_custom_call.1} parent=23 // pred_fallthru
          _
        %v186 = vld [vmem:[%s175] sm:$0xff]
        %v187 = vld [vmem:[%s175 + $0x8] sm:$0xff]
        %v188 = vld [vmem:[%s175 + $0x10] sm:$0xff]
        %v189 = vld [vmem:[%s175 + $0x18] sm:$0xff]
        %v190 = vld [vmem:[%s175 + $0x20] sm:$0xff]
        %v191 = vld [vmem:[%s175 + $0x28] sm:$0xff]
        %v192 = vld [vmem:[%s175 + $0x30] sm:$0xff]
        %v193 = vld [vmem:[%s175 + $0x38] sm:$0xff]
        %v194 = vld [vmem:[%s175 + $0x40] sm:$0xff]
        %v195 = vld [vmem:[%s175 + $0x48] sm:$0xff]
        %v196 = vld [vmem:[%s175 + $0x50] sm:$0xff]
        %v197 = vld [vmem:[%s175 + $0x58] sm:$0xff]
        %v198 = vld [vmem:[%s175 + $0x60] sm:$0xff]
        %v199 = vld [vmem:[%s175 + $0x68] sm:$0xff]
        %v200 = vld [vmem:[%s175 + $0x70] sm:$0xff]
        %v201 = vld [vmem:[%s175 + $0x78] sm:$0xff]
        %v202 = vld [vmem:[%s162] sm:$0x1]
        %vm203 = vcmask 64512
        %v204 = vsel %vm203, %v186, 0.0
        %v205 = vsel %vm203, %v187, 0.0
        %v206 = vadd.f32 %v204, %v205
        %v207 = vsel %vm203, %v188, 0.0
        %v208 = vadd.f32 %v206, %v207
        %v209 = vsel %vm203, %v189, 0.0
        %v210 = vadd.f32 %v208, %v209
        %v211 = vsel %vm203, %v190, 0.0
        %v212 = vadd.f32 %v210, %v211
        %v213 = vsel %vm203, %v191, 0.0
        %v214 = vadd.f32 %v212, %v213
        %v215 = vsel %vm203, %v192, 0.0
        %v216 = vadd.f32 %v214, %v215
        %v217 = vsel %vm203, %v193, 0.0
        %v218 = vadd.f32 %v216, %v217
        %v219 = vsel %vm203, %v194, 0.0
        %v220 = vadd.f32 %v218, %v219
        %v221 = vsel %vm203, %v195, 0.0
        %v222 = vadd.f32 %v220, %v221
        %v223 = vsel %vm203, %v196, 0.0
        %v224 = vadd.f32 %v222, %v223
        %v225 = vsel %vm203, %v197, 0.0
        %v226 = vadd.f32 %v224, %v225
        %v227 = vsel %vm203, %v198, 0.0
        %v228 = vadd.f32 %v226, %v227
        %v229 = vsel %vm203, %v199, 0.0
        %v230 = vadd.f32 %v228, %v229
        %v231 = vsel %vm203, %v200, 0.0
        %v232 = vadd.f32 %v230, %v231
        %v233 = vsel %vm203, %v201, 0.0
        %v234 = vadd.f32 %v232, %v233
        %v235 = vrot.slane %v234, 4
        %v236 = vadd.f32 %v234, %v235
        %v237 = vrot.slane %v236, 2
        %v238 = vadd.f32 %v236, %v237
        %v239 = vrot.slane %v238, 1
        %v240 = vadd.f32 %v238, %v239
        %v241 = vadd.f32 %v202, %v240
        %vm242 = vcmask 57344
        %243 = vst.msk [vmem:[%s162] sm:$0x1] %vm242, %v241
        %v244 = vld [vmem:[%s168] sm:$0x1]
        %v245 = vmul.f32 %v186, %v186
        %v246 = vmul.f32 %v187, %v187
        %v247 = vmul.f32 %v188, %v188
        %v248 = vmul.f32 %v189, %v189
        %v249 = vmul.f32 %v190, %v190
        %v250 = vmul.f32 %v191, %v191
        %v251 = vmul.f32 %v192, %v192
        %v252 = vmul.f32 %v193, %v193
        %v253 = vmul.f32 %v194, %v194
        %v254 = vmul.f32 %v195, %v195
        %v255 = vmul.f32 %v196, %v196
        %v256 = vmul.f32 %v197, %v197
        %v257 = vmul.f32 %v198, %v198
        %v258 = vmul.f32 %v199, %v199
        %v259 = vmul.f32 %v200, %v200
        %v260 = vmul.f32 %v201, %v201
        %v261 = vsel %vm203, %v245, 0.0
        %v262 = vsel %vm203, %v246, 0.0
        %v263 = vadd.f32 %v261, %v262
        %v264 = vsel %vm203, %v247, 0.0
        %v265 = vadd.f32 %v263, %v264
        %v266 = vsel %vm203, %v248, 0.0
        %v267 = vadd.f32 %v265, %v266
        %v268 = vsel %vm203, %v249, 0.0
        %v269 = vadd.f32 %v267, %v268
        %v270 = vsel %vm203, %v250, 0.0
        %v271 = vadd.f32 %v269, %v270
        %v272 = vsel %vm203, %v251, 0.0
        %v273 = vadd.f32 %v271, %v272
        %v274 = vsel %vm203, %v252, 0.0
        %v275 = vadd.f32 %v273, %v274
        %v276 = vsel %vm203, %v253, 0.0
        %v277 = vadd.f32 %v275, %v276
        %v278 = vsel %vm203, %v254, 0.0
        %v279 = vadd.f32 %v277, %v278
        %v280 = vsel %vm203, %v255, 0.0
        %v281 = vadd.f32 %v279, %v280
        %v282 = vsel %vm203, %v256, 0.0
        %v283 = vadd.f32 %v281, %v282
        %v284 = vsel %vm203, %v257, 0.0
        %v285 = vadd.f32 %v283, %v284
        %v286 = vsel %vm203, %v258, 0.0
        %v287 = vadd.f32 %v285, %v286
        %v288 = vsel %vm203, %v259, 0.0
        %v289 = vadd.f32 %v287, %v288
        %v290 = vsel %vm203, %v260, 0.0
        %v291 = vadd.f32 %v289, %v290
        %v292 = vrot.slane %v291, 4
        %v293 = vadd.f32 %v291, %v292
        %v294 = vrot.slane %v293, 2
        %v295 = vadd.f32 %v293, %v294
        %v296 = vrot.slane %v295, 1
        %v297 = vadd.f32 %v295, %v296
        %v298 = vadd.f32 %v244, %v297
        %299 = vst.msk [vmem:[%s168] sm:$0x1] %vm242, %v298
        %s300 = sand.u32 %s70, 1
        %s301 = scalar_lea.sflag [#allocation3], %s300
        %s302 = sand.u32 %s70, 1
        %s303 = scalar_lea.vmem [#allocation2], %s302
        %s304 = sand.u32 %s96, 1
        %s305 = scalar_lea.sflag [#allocation5], %s304
        %s306 = sand.u32 %s96, 1
        %s307 = scalar_lea.vmem [#allocation4], %s306
        // Predicated region
        $region29: #{tpu_custom_call.1} parent=23 // pred_check
          %p308 = pneg %p80
        $region30: #{tpu_custom_call.1} parent=23 // pred_check_branch
          %310 = sbr.rel (%p308) target = $region32
        $region31: #{tpu_custom_call.1} parent=23 // pred_region
          %s312 = ssub.s32 16, 16
          %313 = vsyncadd %s301, %s312
          %s314 = smul.addr %s24, 16
          %s315 = scalar_lea.hbm %s1, %s314
          %s317 = sshll.u32 %s303, 4
          %s318 = int_to_ptr.vmem [resolvable:$true] %s317
          %320 = dma.vmem_to_hbm [thread:$0]  %s318, 16, %s315, %s301
        $region32: #{tpu_custom_call.1} parent=23 // pred_fallthru
          _
        // Predicated region
        $region33: #{tpu_custom_call.1} parent=23 // pred_check
          %p321 = pneg %p106
        $region34: #{tpu_custom_call.1} parent=23 // pred_check_branch
          %323 = sbr.rel (%p321) target = $region36
        $region35: #{tpu_custom_call.1} parent=23 // pred_region
          %s325 = ssub.s32 16, 16
          %326 = vsyncadd %s305, %s325
          %s327 = smul.addr %s24, 16
          %s328 = scalar_lea.hbm %s2, %s327
          %s330 = sshll.u32 %s307, 4
          %s331 = int_to_ptr.vmem [resolvable:$true] %s330
          %333 = dma.vmem_to_hbm [thread:$0]  %s331, 16, %s328, %s305
        $region36: #{tpu_custom_call.1} parent=23 // pred_fallthru
          _
      $region24: #{tpu_custom_call.1} parent=5 // pred_fallthru
        _
      %p334 = scmp.le.s32.totalorder 2, %s15
      // Predicated region
      $region37: #{tpu_custom_call.1} parent=5 // pred_check
        %p335 = pneg %p334
      $region38: #{tpu_custom_call.1} parent=5 // pred_check_branch
        %337 = sbr.rel (%p335) target = $region40
      $region39: #{tpu_custom_call.1} parent=5 // pred_region
        %s338 = ssub.s32 %s15, 2
        // Predicated region
        $region41: #{tpu_custom_call.1} parent=39 // pred_check
          %p339 = pneg %p86
        $region42: #{tpu_custom_call.1} parent=39 // pred_check_branch
          %341 = sbr.rel (%p339) target = $region44
        $region43: #{tpu_custom_call.1} parent=39 // pred_region
          %s342 = sand.u32 %s71, 1
          %s343 = scalar_lea.sflag [#allocation3], %s342
          %s344 = sand.u32 %s71, 1
          %s345 = scalar_lea.vmem [#allocation2], %s344
          %346 = dma.done %s343, 16
        $region44: #{tpu_custom_call.1} parent=39 // pred_fallthru
          _
        // Predicated region
        $region45: #{tpu_custom_call.1} parent=39 // pred_check
          %p347 = pneg %p112
        $region46: #{tpu_custom_call.1} parent=39 // pred_check_branch
          %349 = sbr.rel (%p347) target = $region48
        $region47: #{tpu_custom_call.1} parent=39 // pred_region
          %s350 = sand.u32 %s97, 1
          %s351 = scalar_lea.sflag [#allocation5], %s350
          %s352 = sand.u32 %s97, 1
          %s353 = scalar_lea.vmem [#allocation4], %s352
          %354 = dma.done %s351, 16
        $region48: #{tpu_custom_call.1} parent=39 // pred_fallthru
          _
      $region40: #{tpu_custom_call.1} parent=5 // pred_fallthru
        _
    $region6: #{tpu_custom_call.1} parent=1 // loop_footer
      %s19 = sadd.s32 1, %s15
    $region7: #{tpu_custom_call.1} parent=1 // loop_footer_branch
      %14 = sbr.rel target = $region3
    $region8: #{tpu_custom_call.1} parent=1 // loop_exit
      _
    %355 = vsyncpa [#allocation3], 1
    %s356 = scalar_lea.sflag [#allocation3], 1
    %357 = vsyncpa %s356, 1
    %358 = vsyncpa [#allocation5], 1
    %s359 = scalar_lea.sflag [#allocation5], 1
    %360 = vsyncpa %s359, 1

</llo_original>
